<compile_context>
chip_gen: v6e
topology: v6e:2x2x1
jax: 0.10.0
libtpu: 0.0.40
codegen_flags: <defaults>
</compile_context>

<pallas_src>
import jax
import jax.numpy as jnp
from jax.experimental import pallas as pl
from jax.experimental.pallas import tpu as pltpu


def _round_up(x, m):
    return (x + m - 1) // m * m


def _gather_rows_kernel(idx_ref, pc_t_ref, out_ref):
    """Gather one block of G sampled rows.

    idx_ref : SMEM (s_pad,) int32            -- scalar-prefetched sample indices.
    pc_t_ref: VMEM (num_points, in_features) -- whole point cloud, resident.
    out_ref : VMEM (G, in_features)          -- gathered block for this grid step.
    """
    g_block = out_ref.shape[0]                 # static
    base = pl.program_id(0) * g_block          # first sample handled by this step

    def body(g, carry):
        idx = idx_ref[base + g]                                    # SMEM scalar read
        out_ref[pl.ds(g, 1), :] = pc_t_ref[pl.ds(idx, 1), :]       # dyn. sublane copy
        return carry

    jax.lax.fori_loop(0, g_block, body, 0, unroll=8)


def random_sample(pc, num_samples, key, *, block_samples=256):
    """Randomly sample `num_samples` points (columns) of pc without replacement.

    Parameters
    ----------
    pc : jnp.ndarray of shape (in_features, num_points)
    num_samples : int
    key : jax.random.PRNGKey  (replaces np.random state for determinism)

    Returns
    -------
    pc_sampled : jnp.ndarray of shape (in_features, num_samples)
    sample_indices : jnp.ndarray of shape (num_samples,)
    """
    if pc.ndim != 2:
        raise ValueError("pc must be a 2-D tensor of shape (in_features, num_points).")
    in_features, num_points = pc.shape
    if num_samples > num_points:
        raise ValueError(
            f"num_samples must not exceed the number of input points ({num_points})."
        )

    # Sampling without replacement (glue, off the hot path).
    # TODO(synk): for very large num_points, replace the O(N) permutation with an
    # O(num_samples) without-replacement sampler.
    sample_indices = jax.random.permutation(key, num_points)[:num_samples]
    # Sorted order -> monotonic addresses for the gather; still a uniform random subset.
    sample_indices = jnp.sort(sample_indices).astype(jnp.int32)

    # Samples per grid step: multiple of 8 (sublane), capped at block_samples.
    g = min(int(block_samples), _round_up(num_samples, 8))
    g = _round_up(g, 8)
    s_pad = _round_up(num_samples, g)
    if s_pad > num_samples:
        idx_padded = jnp.concatenate(
            [sample_indices, jnp.zeros((s_pad - num_samples,), jnp.int32)]
        )
    else:
        idx_padded = sample_indices

    # Internal (num_points, in_features) layout: gather along the sublane axis.
    # NOTE: the whole (transposed) point cloud is kept resident in VMEM; typical
    # point clouds (N*F*4 bytes, a few MB) fit comfortably even in v7x's 64 MiB.
    pc_t = pc.T

    itemsize = jnp.dtype(pc.dtype).itemsize
    cost = pl.CostEstimate(
        flops=0,
        transcendentals=0,
        bytes_accessed=(num_points * in_features + 2 * s_pad * in_features) * itemsize,
    )

    grid_spec = pltpu.PrefetchScalarGridSpec(
        num_scalar_prefetch=1,
        grid=(s_pad // g,),
        in_specs=[
            # Whole point cloud; constant block index => DMA'd into VMEM once.
            pl.BlockSpec((num_points, in_features), lambda i, idx_ref: (0, 0)),
        ],
        out_specs=pl.BlockSpec((g, in_features), lambda i, idx_ref: (i, 0)),
    )

    gathered = pl.pallas_call(
        _gather_rows_kernel,
        grid_spec=grid_spec,
        out_shape=jax.ShapeDtypeStruct((s_pad, in_features), pc.dtype),
        compiler_params=pltpu.CompilerParams(
            # Every output block is independent -> shard across TCs on v7x.
            dimension_semantics=("parallel",),
        ),
        cost_estimate=cost,
    )(idx_padded, pc_t)

    # Back to PyTorch layout: (in_features, num_samples); drop padding rows.
    return gathered[:num_samples].T, sample_indices


if __name__ == "__main__":
    key = jax.random.PRNGKey(0)
    k_data, k_sample = jax.random.split(key)

    in_features = 4      # e.g. xyz + intensity
    num_points = 16
    num_samples = 8

    pc = jax.random.normal(k_data, (in_features, num_points), dtype=jnp.float32)

    pc_sampled, idx = random_sample(pc, num_samples, k_sample)
    pc_sampled = jax.block_until_ready(pc_sampled)

    # Reference check: plain JAX gather with the same indices.
    ref = pc[:, idx]
    assert pc_sampled.shape == (in_features, num_samples), pc_sampled.shape
    assert jnp.array_equal(pc_sampled, ref), "kernel output mismatch vs reference gather"

    print("KERNEL_OK")
</pallas_src>

<mosaic_0001>
module attributes {stable_mosaic.version = 11 : i64} {
  func.func @_gather_rows_kernel(%arg0: i32, %arg1: memref<8xi32, #tpu.memory_space<smem>>, %arg2: memref<16x4xf32, #tpu.memory_space<vmem>>, %arg3: memref<8x4xf32, #tpu.memory_space<vmem>>) attributes {dimension_semantics = [#tpu.dimension_semantics<parallel>], iteration_bounds = array<i64: 1>, scalar_prefetch = 1 : i64, scratch_operands = 0 : i64, tpu.core_type = #tpu.core_type<tc>, window_params = [{pipeline_mode = #tpu.pipeline_mode<synchronous>, transform_indices = @transform_0, window_bounds = array<i64: 16, 4>}, {transform_indices = @transform_1, window_bounds = array<i64: 8, 4>}]} {
    %c8_i32 = arith.constant 8 : i32
    %0 = arith.muli %arg0, %c8_i32 : i32
    %c0_i32 = arith.constant 0 : i32
    %1 = arith.addi %0, %c0_i32 : i32
    %2 = arith.index_cast %1 : i32 to index
    %3 = memref.load %arg1[%2] : memref<8xi32, #tpu.memory_space<smem>>
    %4 = arith.index_cast %3 : i32 to index
    %c0 = arith.constant 0 : index
    %5 = vector.load %arg2[%4, %c0] : memref<16x4xf32, #tpu.memory_space<vmem>>, vector<1x4xf32>
    %6 = arith.index_cast %c0_i32 : i32 to index
    %c0_0 = arith.constant 0 : index
    %7 = vector.load %arg3[%6, %c0_0] : memref<8x4xf32, #tpu.memory_space<vmem>>, vector<1x4xf32>
    tpu.vector_store %arg3[%6, %c0_0], %5 {strides = array<i32>} : memref<8x4xf32, #tpu.memory_space<vmem>>, vector<1x4xf32>,
    %c1_i32 = arith.constant 1 : i32
    %8 = arith.addi %0, %c1_i32 : i32
    %9 = arith.index_cast %8 : i32 to index
    %10 = memref.load %arg1[%9] : memref<8xi32, #tpu.memory_space<smem>>
    %11 = arith.index_cast %10 : i32 to index
    %c0_1 = arith.constant 0 : index
    %12 = vector.load %arg2[%11, %c0_1] : memref<16x4xf32, #tpu.memory_space<vmem>>, vector<1x4xf32>
    %13 = arith.index_cast %c1_i32 : i32 to index
    %c0_2 = arith.constant 0 : index
    %14 = vector.load %arg3[%13, %c0_2] : memref<8x4xf32, #tpu.memory_space<vmem>>, vector<1x4xf32>
    tpu.vector_store %arg3[%13, %c0_2], %12 {strides = array<i32>} : memref<8x4xf32, #tpu.memory_space<vmem>>, vector<1x4xf32>,
    %c2_i32 = arith.constant 2 : i32
    %15 = arith.addi %0, %c2_i32 : i32
    %16 = arith.index_cast %15 : i32 to index
    %17 = memref.load %arg1[%16] : memref<8xi32, #tpu.memory_space<smem>>
    %18 = arith.index_cast %17 : i32 to index
    %c0_3 = arith.constant 0 : index
    %19 = vector.load %arg2[%18, %c0_3] : memref<16x4xf32, #tpu.memory_space<vmem>>, vector<1x4xf32>
    %20 = arith.index_cast %c2_i32 : i32 to index
    %c0_4 = arith.constant 0 : index
    %21 = vector.load %arg3[%20, %c0_4] : memref<8x4xf32, #tpu.memory_space<vmem>>, vector<1x4xf32>
    tpu.vector_store %arg3[%20, %c0_4], %19 {strides = array<i32>} : memref<8x4xf32, #tpu.memory_space<vmem>>, vector<1x4xf32>,
    %c3_i32 = arith.constant 3 : i32
    %22 = arith.addi %0, %c3_i32 : i32
    %23 = arith.index_cast %22 : i32 to index
    %24 = memref.load %arg1[%23] : memref<8xi32, #tpu.memory_space<smem>>
    %25 = arith.index_cast %24 : i32 to index
    %c0_5 = arith.constant 0 : index
    %26 = vector.load %arg2[%25, %c0_5] : memref<16x4xf32, #tpu.memory_space<vmem>>, vector<1x4xf32>
    %27 = arith.index_cast %c3_i32 : i32 to index
    %c0_6 = arith.constant 0 : index
    %28 = vector.load %arg3[%27, %c0_6] : memref<8x4xf32, #tpu.memory_space<vmem>>, vector<1x4xf32>
    tpu.vector_store %arg3[%27, %c0_6], %26 {strides = array<i32>} : memref<8x4xf32, #tpu.memory_space<vmem>>, vector<1x4xf32>,
    %c4_i32 = arith.constant 4 : i32
    %29 = arith.addi %0, %c4_i32 : i32
    %30 = arith.index_cast %29 : i32 to index
    %31 = memref.load %arg1[%30] : memref<8xi32, #tpu.memory_space<smem>>
    %32 = arith.index_cast %31 : i32 to index
    %c0_7 = arith.constant 0 : index
    %33 = vector.load %arg2[%32, %c0_7] : memref<16x4xf32, #tpu.memory_space<vmem>>, vector<1x4xf32>
    %34 = arith.index_cast %c4_i32 : i32 to index
    %c0_8 = arith.constant 0 : index
    %35 = vector.load %arg3[%34, %c0_8] : memref<8x4xf32, #tpu.memory_space<vmem>>, vector<1x4xf32>
    tpu.vector_store %arg3[%34, %c0_8], %33 {strides = array<i32>} : memref<8x4xf32, #tpu.memory_space<vmem>>, vector<1x4xf32>,
    %c5_i32 = arith.constant 5 : i32
    %36 = arith.addi %0, %c5_i32 : i32
    %37 = arith.index_cast %36 : i32 to index
    %38 = memref.load %arg1[%37] : memref<8xi32, #tpu.memory_space<smem>>
    %39 = arith.index_cast %38 : i32 to index
    %c0_9 = arith.constant 0 : index
    %40 = vector.load %arg2[%39, %c0_9] : memref<16x4xf32, #tpu.memory_space<vmem>>, vector<1x4xf32>
    %41 = arith.index_cast %c5_i32 : i32 to index
    %c0_10 = arith.constant 0 : index
    %42 = vector.load %arg3[%41, %c0_10] : memref<8x4xf32, #tpu.memory_space<vmem>>, vector<1x4xf32>
    tpu.vector_store %arg3[%41, %c0_10], %40 {strides = array<i32>} : memref<8x4xf32, #tpu.memory_space<vmem>>, vector<1x4xf32>,
    %c6_i32 = arith.constant 6 : i32
    %43 = arith.addi %0, %c6_i32 : i32
    %44 = arith.index_cast %43 : i32 to index
    %45 = memref.load %arg1[%44] : memref<8xi32, #tpu.memory_space<smem>>
    %46 = arith.index_cast %45 : i32 to index
    %c0_11 = arith.constant 0 : index
    %47 = vector.load %arg2[%46, %c0_11] : memref<16x4xf32, #tpu.memory_space<vmem>>, vector<1x4xf32>
    %48 = arith.index_cast %c6_i32 : i32 to index
    %c0_12 = arith.constant 0 : index
    %49 = vector.load %arg3[%48, %c0_12] : memref<8x4xf32, #tpu.memory_space<vmem>>, vector<1x4xf32>
    tpu.vector_store %arg3[%48, %c0_12], %47 {strides = array<i32>} : memref<8x4xf32, #tpu.memory_space<vmem>>, vector<1x4xf32>,
    %c7_i32 = arith.constant 7 : i32
    %50 = arith.addi %0, %c7_i32 : i32
    %51 = arith.index_cast %50 : i32 to index
    %52 = memref.load %arg1[%51] : memref<8xi32, #tpu.memory_space<smem>>
    %53 = arith.index_cast %52 : i32 to index
    %c0_13 = arith.constant 0 : index
    %54 = vector.load %arg2[%53, %c0_13] : memref<16x4xf32, #tpu.memory_space<vmem>>, vector<1x4xf32>
    %55 = arith.index_cast %c7_i32 : i32 to index
    %c0_14 = arith.constant 0 : index
    %56 = vector.load %arg3[%55, %c0_14] : memref<8x4xf32, #tpu.memory_space<vmem>>, vector<1x4xf32>
    tpu.vector_store %arg3[%55, %c0_14], %54 {strides = array<i32>} : memref<8x4xf32, #tpu.memory_space<vmem>>, vector<1x4xf32>,
    %c8_i32_15 = arith.constant 8 : i32
    return
  }
  func.func @transform_0(%arg0: i32, %arg1: memref<8xi32, #tpu.memory_space<smem>>) -> (i32, i32) {
    %c0_i32 = arith.constant 0 : i32
    %c0_i32_0 = arith.constant 0 : i32
    %c0_i32_1 = arith.constant 0 : i32
    return %c0_i32, %c0_i32_0 : i32, i32
  }
  func.func @transform_1(%arg0: i32, %arg1: memref<8xi32, #tpu.memory_space<smem>>) -> (i32, i32) {
    %c0_i32 = arith.constant 0 : i32
    %c0_i32_0 = arith.constant 0 : i32
    return %arg0, %c0_i32 : i32, i32
  }
}

</mosaic_0001>

<llo_original>
// kernel: tpu_custom_call.1
$region0: #{tpu_custom_call.1}
  #allocation0 [shape = 'u32[]', space=smem, size = 0x4, offset = 0x4, fixed_abs, tag = 'smem constant byte address 0x4 - core index']
  #allocation1 [shape = 'u32[144,128]{1,0:T(1,128)}', space=vmem, size = 0x12000, scoped, tag = 'internal scratch']
  #allocation2 [shape = 's32[1]{0}', space=sflag, size = 0x4, scoped, tag = 'scoped memory for tpu_custom_call.1']
  #allocation3 [shape = 'u8[512]{0}', space=smem, size = 0x200, scoped, tag = 'prefetched SMEM operand 0']
  %s0 = inlined_call_operand.vmem [shape: s32[8], index: 0, kind: input, shape index: {}]
  %s1 = inlined_call_operand.vmem [shape: f32[16,4], index: 1, kind: input, shape index: {}]
  %s2 = inlined_call_operand.vmem [shape: f32[8,4], index: 2, kind: output, shape index: {}]
  %s3 = sld [smem:[#allocation0]]
  $region14: #{tpu_custom_call.1} parent=0
    _
  %s5 = ssub.s32 1, %s3
  %s6 = scalar_select 0, %s5, %s3
  %s7 = sshll.u32 %s0, 4
  %s8 = int_to_ptr.vmem [resolvable:$true] %s7
  %10 = dma.vmem_to_smem %s8, 16, [#allocation3], [#allocation2]
  %11 = dma.done [#allocation2], 16
  %12 = sfence
  // Predicated region
  $region2: #{tpu_custom_call.1} parent=0 // pred_check
    _
  $region3: #{tpu_custom_call.1} parent=0 // pred_check_branch
    %14 = sbr.rel (0) target = $region5
  $region4: #{tpu_custom_call.1} parent=0 // pred_region
    _
  $region5: #{tpu_custom_call.1} parent=0 // pred_fallthru
    _
  %s15 = smul.u32 0, 8
  %s16 = sld [smem:[#allocation3 + %s15]]
  %s17 = scalar_lea.vmem %s1, %s16
  %v18 = vld [vmem:[%s17] sm:$0x1]
  %vm19 = vcmask 24576
  %20 = vst.msk [vmem:[%s2] sm:$0x1] %vm19, %v18
  %s21 = sadd.s32 %s15, 1
  %s22 = sld [smem:[#allocation3 + %s21]]
  %s23 = scalar_lea.vmem %s1, %s22
  %v24 = vld [vmem:[%s23] sm:$0x1]
  %25 = vst.msk [vmem:[%s2 + $0x1] sm:$0x1] %vm19, %v24
  %s26 = sadd.s32 %s15, 2
  %s27 = sld [smem:[#allocation3 + %s26]]
  %s28 = scalar_lea.vmem %s1, %s27
  %v29 = vld [vmem:[%s28] sm:$0x1]
  %30 = vst.msk [vmem:[%s2 + $0x2] sm:$0x1] %vm19, %v29
  %s31 = sadd.s32 %s15, 3
  %s32 = sld [smem:[#allocation3 + %s31]]
  %s33 = scalar_lea.vmem %s1, %s32
  %v34 = vld [vmem:[%s33] sm:$0x1]
  %35 = vst.msk [vmem:[%s2 + $0x3] sm:$0x1] %vm19, %v34
  %s36 = sadd.s32 %s15, 4
  %s37 = sld [smem:[#allocation3 + %s36]]
  %s38 = scalar_lea.vmem %s1, %s37
  %v39 = vld [vmem:[%s38] sm:$0x1]
  %40 = vst.msk [vmem:[%s2 + $0x4] sm:$0x1] %vm19, %v39
  %s41 = sadd.s32 %s15, 5
  %s42 = sld [smem:[#allocation3 + %s41]]
  %s43 = scalar_lea.vmem %s1, %s42
  %v44 = vld [vmem:[%s43] sm:$0x1]
  %45 = vst.msk [vmem:[%s2 + $0x5] sm:$0x1] %vm19, %v44
  %s46 = sadd.s32 %s15, 6
  %s47 = sld [smem:[#allocation3 + %s46]]
  %s48 = scalar_lea.vmem %s1, %s47
  %v49 = vld [vmem:[%s48] sm:$0x1]
  %50 = vst.msk [vmem:[%s2 + $0x6] sm:$0x1] %vm19, %v49
  %s51 = sadd.s32 %s15, 7
  %s52 = sld [smem:[#allocation3 + %s51]]
  %s53 = scalar_lea.vmem %s1, %s52
  %v54 = vld [vmem:[%s53] sm:$0x1]
  %55 = vst.msk [vmem:[%s2 + $0x7] sm:$0x1] %vm19, %v54
  // Predicated region
  $region6: #{tpu_custom_call.1} parent=0 // pred_check
    _
  $region7: #{tpu_custom_call.1} parent=0 // pred_check_branch
    %57 = sbr.rel (0) target = $region9
  $region8: #{tpu_custom_call.1} parent=0 // pred_region
    _
  $region9: #{tpu_custom_call.1} parent=0 // pred_fallthru
    _
  // Predicated region
  $region10: #{tpu_custom_call.1} parent=0 // pred_check
    _
  $region11: #{tpu_custom_call.1} parent=0 // pred_check_branch
    %59 = sbr.rel (0) target = $region13
  $region12: #{tpu_custom_call.1} parent=0 // pred_region
    _
  $region13: #{tpu_custom_call.1} parent=0 // pred_fallthru
    _

</llo_original>
